<compile_context>
chip_gen: v5e
topology: v5e:2x2
jax: 0.10.0
libtpu: 0.0.40
codegen_flags: <defaults>
</compile_context>

<pallas_src>
import jax
import jax.numpy as jnp
import numpy as np
from jax.experimental import pallas as pl
from jax.experimental.pallas import tpu as pltpu  # used for scale-up knobs (CompilerParams/VMEM)


# --------------------------------------------------------------------------
# Fused kernel
# --------------------------------------------------------------------------
def eiie_fused_kernel(x_ref, wih_ref, bih_ref, whh_ref, cw_ref, pvm_ref, selb_ref,
                      w1e_ref, w1p_ref, b1_ref, w2_ref, b2_ref, out_ref):
    """Per-(batch,asset) LSTM + Conv1d(last position) + actor/critic heads.

      x_ref   : [N, T*F]     flattened per-row input sequences (N = B*A), f32
      wih_ref : [T*F, T*4H]  block-diagonal input->gates weights, f32
      bih_ref : [1, T*4H]    per-step gate bias tiled T times, f32
      whh_ref : [H, 4H]      hidden->gates weights, gate order (i,f,g,o), bf16
      cw_ref  : [K, H]       conv taps for the last output position, f32
      pvm_ref : [B, P]       previous portfolio vector
      selb_ref: [B, N]       selb[b, n] = 1 if n // A == b
      w1e_ref : [A, 128]     fused (actor|critic) fc1 weights, eie part
      w1p_ref : [P, 128]     fused (actor|critic) fc1 weights, pvm part
      b1_ref  : [1, 128]     fused fc1 bias (Conv1d bias folded in)
      w2_ref  : [128, A+1]   block-diagonal fused fc2 (actor -> cols 0:A, critic -> A)
      b2_ref  : [1, A+1]     fused fc2 bias
      out_ref : [B, A+1]     lanes 0:A = softmax portfolio weights, lane A = value
    """
    N = x_ref.shape[0]
    H, G = whh_ref.shape                      # G = 4H (gate lanes i | f | g | o)
    T = bih_ref.shape[1] // G
    K = cw_ref.shape[0]
    B, Ap1 = out_ref.shape
    A = Ap1 - 1

    # ---- Input projection for all T steps: ONE MXU matmul, off the serial path ----
    xw_all = (jnp.dot(x_ref[...], wih_ref[...], preferred_element_type=jnp.float32)
              + bih_ref[...])                                          # [N, T*4H]

    whh = whh_ref[...]                                                 # [H, 4H] bf16
    cw = cw_ref[...]                                                   # [K, H]  f32

    # ---- Statically unrolled LSTM recurrence; conv accumulated elementwise ----
    h = None
    c = None
    acc = jnp.zeros((N, H), jnp.float32)
    for t in range(T):
        pre = xw_all[:, t * G:(t + 1) * G]                             # [N, 4H]
        if t > 0:   # h_0 = 0 -> skip the recurrent matmul on the first step
            pre = pre + jnp.dot(h.astype(jnp.bfloat16), whh,
                                preferred_element_type=jnp.float32)
        sig = jax.nn.sigmoid(pre)    # one full-width EUP pass (i/f/o lanes used)
        tnh = jnp.tanh(pre)          # one full-width EUP pass (g lanes used)
        i_g = sig[:, 0 * H:1 * H]
        f_g = sig[:, 1 * H:2 * H]
        g_g = tnh[:, 2 * H:3 * H]
        o_g = sig[:, 3 * H:4 * H]
        c = i_g * g_g if t == 0 else f_g * c + i_g * g_g
        h = o_g * jnp.tanh(c)
        if t >= T - K:               # only the last K steps feed the conv output
            k = t - (T - K)
            acc = acc + h * cw[k:k + 1, :]

    # ---- Conv1d last position: single cross-lane reduction (conv bias is in b1) ----
    rowsum = jnp.sum(acc, axis=-1, keepdims=True)                      # [N, 1]

    # ---- Fused actor/critic fc1 (sel_a folded into a row-tiled w1e) ----
    w1e_n = jnp.concatenate([w1e_ref[...]] * (N // A), axis=0)         # [N, 128]
    h1 = (jnp.dot(selb_ref[...], rowsum * w1e_n, preferred_element_type=jnp.float32)
          + jnp.dot(pvm_ref[...], w1p_ref[...], preferred_element_type=jnp.float32)
          + b1_ref[...])
    h1 = jnp.maximum(h1, 0.0)                                          # [B, 128]

    # ---- Fused fc2 + masked softmax over the actor lanes, value at lane A ----
    out2 = jnp.dot(h1, w2_ref[...], preferred_element_type=jnp.float32) + b2_ref[...]
    lane = jax.lax.broadcasted_iota(jnp.int32, out2.shape, 1)
    is_logit = lane < A
    masked = jnp.where(is_logit, out2, jnp.float32(-1e30))
    m = jnp.max(masked, axis=-1, keepdims=True)
    e = jnp.exp(masked - m)
    denom = jnp.sum(e, axis=-1, keepdims=True)
    w = e * pl.reciprocal(denom, approx=True)
    out_ref[...] = jnp.where(is_logit, w, out2)


# --------------------------------------------------------------------------
# Wrapper: only a free reshape, a trace-time constant, and ONE pallas_call.
# --------------------------------------------------------------------------
@jax.jit
def actor_critic_eiie_forward(x, prev_portfolio_vector, p):
    B, A, T, F = x.shape
    N = B * A

    # Free metadata reshape: [B,A,T,F] -> [N, T*F] (contiguous dims collapse).
    x2d = x.reshape(N, T * F).astype(jnp.float32)

    # Constant selection matrix (baked at trace time): selb[b, n] = (n // A == b).
    n_idx = np.arange(N)
    sel_b = jnp.asarray((n_idx[None, :] // A) == np.arange(B)[:, None], jnp.float32)

    out = pl.pallas_call(
        eiie_fused_kernel,
        out_shape=jax.ShapeDtypeStruct((B, A + 1), jnp.float32),
    )(x2d, p["wih_blk"], p["b_blk"], p["whh_bf16"], p["cwk"],
      prev_portfolio_vector.astype(jnp.float32), sel_b,
      p["w1e"], p["w1p"], p["b1"], p["w2"], p["b2"])

    # Single lane-contiguous kernel output: weights in lanes 0:A, value at lane A.
    return out[:, :A], out[:, A:A + 1]


# --------------------------------------------------------------------------
# Pure-JAX reference using raw PyTorch-layout parameters (correctness check)
# --------------------------------------------------------------------------
def reference_forward(x, pvm, p):
    B, A, T, F = x.shape
    H = p["w_hh"].shape[1]
    K = p["conv_w"].shape[-1]
    N = B * A
    xs = x.reshape(N, T, F).transpose(1, 0, 2)                          # [T, N, F]

    wih = p["w_ih"].reshape(4, H, F)    # gate order (i, f, g, o)
    whh = p["w_hh"].reshape(4, H, H)
    b = (p["b_ih"] + p["b_hh"]).reshape(4, H)

    def step(carry, x_t):
        h, c = carry

        def gate(g):
            return x_t @ wih[g].T + h @ whh[g].T + b[g]

        i = jax.nn.sigmoid(gate(0))
        f = jax.nn.sigmoid(gate(1))
        g_ = jnp.tanh(gate(2))
        o = jax.nn.sigmoid(gate(3))
        c = f * c + i * g_
        h = o * jnp.tanh(c)
        return (h, c), h

    init = (jnp.zeros((N, H), jnp.float32), jnp.zeros((N, H), jnp.float32))
    _, hs = jax.lax.scan(step, init, xs)                                # [T, N, H]
    last = hs[T - K:]                                                   # [K, N, H]
    eie = jnp.einsum("knh,hk->n", last, p["conv_w"][0]) + p["conv_b"][0]
    eie = eie.reshape(B, A)

    inp = jnp.concatenate([eie, pvm], axis=-1)
    a1 = jax.nn.relu(inp @ p["aw1"].T + p["ab1"])
    w = jax.nn.softmax(a1 @ p["aw2"].T + p["ab2"], axis=-1)
    c1 = jax.nn.relu(inp @ p["cw1"].T + p["cb1"])
    v = c1 @ p["cw2"].T + p["cb2"]
    return w, v


# --------------------------------------------------------------------------
# Parameter init (PyTorch layouts) + fused/kernel-friendly packing
# --------------------------------------------------------------------------
def init_params(key, num_assets, input_size, lstm_hidden, cnn_kernel, pvm_size, seq_len):
    A, F, H, K, P, T = num_assets, input_size, lstm_hidden, cnn_kernel, pvm_size, seq_len
    G = 4 * H
    ks = jax.random.split(key, 14)
    u = lambda k, shape: jax.random.uniform(k, shape, jnp.float32, -0.1, 0.1)

    # Raw PyTorch-layout parameters (used by the reference).
    w_ih = u(ks[0], (4 * H, F))
    w_hh = u(ks[1], (4 * H, H))
    b_ih = u(ks[2], (4 * H,))
    b_hh = u(ks[3], (4 * H,))
    conv_w = u(ks[4], (1, H, K))
    conv_b = u(ks[5], (1,))
    aw1 = u(ks[6], (64, A + P))
    ab1 = u(ks[7], (64,))
    aw2 = u(ks[8], (A, 64))
    ab2 = u(ks[9], (A,))
    cw1 = u(ks[10], (64, A + P))
    cb1 = u(ks[11], (64,))
    cw2 = u(ks[12], (1, 64))
    cb2 = u(ks[13], (1,))

    # Fused LSTM packing: gate order (i, f, g, o) along lanes.
    wih_all = w_ih.T                                               # [F, 4H]
    b_all = (b_ih + b_hh)[None, :]                                 # [1, 4H]

    # Block-diagonal input-projection weight: XW for ALL T steps in one matmul.
    #   x2d [N, T*F] @ wih_blk [T*F, T*4H] -> lanes t*4H:(t+1)*4H == x_t @ W_ih
    wih_blk = jnp.zeros((T * F, T * G), jnp.float32)
    for t in range(T):
        wih_blk = wih_blk.at[t * F:(t + 1) * F, t * G:(t + 1) * G].set(wih_all)
    b_blk = jnp.tile(b_all, (1, T))                                # [1, T*4H]

    # Recurrent weight as bf16 (MXU operand; accumulation stays f32 in-kernel).
    whh_bf16 = w_hh.T.astype(jnp.bfloat16)                         # [H, 4H]

    # Conv taps for the LAST output position only: tap k multiplies h_{T-K+k}.
    cwk = conv_w[0].T                                              # [K, H]

    # Fused heads, layer 1: actor -> lanes 0:64, critic -> lanes 64:128.
    w1e = jnp.concatenate([aw1[:, :A].T, cw1[:, :A].T], axis=1)    # [A, 128]
    w1p = jnp.concatenate([aw1[:, A:].T, cw1[:, A:].T], axis=1)    # [P, 128]
    b1 = jnp.concatenate([ab1, cb1])[None, :]                      # [1, 128]
    # Fold Conv1d bias: (eie + cb) @ w1e == eie @ w1e + cb * sum_rows(w1e).
    b1 = b1 + conv_b[0] * jnp.sum(w1e, axis=0, keepdims=True)

    # Fused heads, layer 2: block-diagonal [128, A+1] (actor -> cols 0:A, critic -> A).
    w2 = jnp.zeros((128, A + 1), jnp.float32)
    w2 = w2.at[:64, :A].set(aw2.T)
    w2 = w2.at[64:, A:].set(cw2.T)
    b2 = jnp.concatenate([ab2, cb2])[None, :]                      # [1, A+1]

    return dict(
        # raw (for the reference)
        w_ih=w_ih, w_hh=w_hh, b_ih=b_ih, b_hh=b_hh,
        conv_w=conv_w, conv_b=conv_b,
        aw1=aw1, ab1=ab1, aw2=aw2, ab2=ab2, cw1=cw1, cb1=cb1, cw2=cw2, cb2=cb2,
        # packed (for the kernel)
        wih_blk=wih_blk, b_blk=b_blk, whh_bf16=whh_bf16, cwk=cwk,
        w1e=w1e, w1p=w1p, b1=b1, w2=w2, b2=b2,
    )


if __name__ == "__main__":
    # Small shapes consistent with the module.
    B = 2            # batch
    A = 4            # num_assets
    T = 8            # sequence length
    F = 3            # input_size (features per asset per step)
    H = 32           # lstm_hidden_size
    K = 3            # cnn_kernel_size
    P = 4            # pvm_size

    key = jax.random.PRNGKey(0)
    k_param, k_x, k_pvm = jax.random.split(key, 3)
    params = init_params(k_param, A, F, H, K, P, T)

    x = jax.random.normal(k_x, (B, A, T, F), jnp.float32)
    prev_pv = jax.nn.softmax(jax.random.normal(k_pvm, (B, P), jnp.float32), axis=-1)

    weights, value = actor_critic_eiie_forward(x, prev_pv, params)
    weights = jax.block_until_ready(weights)
    value = jax.block_until_ready(value)

    # Pure-f32 reference (PyTorch semantics). The kernel's recurrent matmul uses bf16
    # operands (f32 accumulation), so compare with a correspondingly looser tolerance;
    # the softmax-normalization check stays tight.
    w_ref, v_ref = reference_forward(x, prev_pv, params)
    np.testing.assert_allclose(np.asarray(weights), np.asarray(w_ref), rtol=2e-2, atol=2e-2)
    np.testing.assert_allclose(np.asarray(value), np.asarray(v_ref), rtol=2e-2, atol=2e-2)
    assert weights.shape == (B, A) and value.shape == (B, 1)
    np.testing.assert_allclose(np.asarray(weights).sum(-1), np.ones(B), rtol=2e-3, atol=2e-3)

    print("KERNEL_OK")
</pallas_src>

<mosaic_0001>
module attributes {stable_mosaic.version = 11 : i64} {
  func.func @eiie_fused_kernel(%arg0: memref<8x24xf32, #tpu.memory_space<vmem>>, %arg1: memref<24x1024xf32, #tpu.memory_space<vmem>>, %arg2: memref<1x1024xf32, #tpu.memory_space<vmem>>, %arg3: memref<32x128xbf16, #tpu.memory_space<vmem>>, %arg4: memref<3x32xf32, #tpu.memory_space<vmem>>, %arg5: memref<2x4xf32, #tpu.memory_space<vmem>>, %arg6: memref<2x8xf32, #tpu.memory_space<vmem>>, %arg7: memref<4x128xf32, #tpu.memory_space<vmem>>, %arg8: memref<4x128xf32, #tpu.memory_space<vmem>>, %arg9: memref<1x128xf32, #tpu.memory_space<vmem>>, %arg10: memref<128x5xf32, #tpu.memory_space<vmem>>, %arg11: memref<1x5xf32, #tpu.memory_space<vmem>>, %arg12: memref<2x5xf32, #tpu.memory_space<vmem>>) attributes {dimension_semantics = [], scalar_prefetch = 0 : i64, scratch_operands = 0 : i64, tpu.core_type = #tpu.core_type<tc>} {
    %c0 = arith.constant 0 : index
    %c0_0 = arith.constant 0 : index
    %0 = vector.load %arg0[%c0, %c0_0] : memref<8x24xf32, #tpu.memory_space<vmem>>, vector<8x24xf32>
    %c0_1 = arith.constant 0 : index
    %c0_2 = arith.constant 0 : index
    %1 = vector.load %arg1[%c0_1, %c0_2] : memref<24x1024xf32, #tpu.memory_space<vmem>>, vector<24x1024xf32>
    %cst = arith.constant dense<0.000000e+00> : vector<8x1024xf32>
    %2 = tpu.matmul %0, %1, %cst {dimension_numbers = #tpu.dot_dimension_numbers<[1], [0], [0], [1], [0, 0, 1, 1], [], []>} : vector<8x24xf32>, vector<24x1024xf32>, vector<8x1024xf32> -> vector<8x1024xf32>
    %c0_3 = arith.constant 0 : index
    %c0_4 = arith.constant 0 : index
    %3 = vector.load %arg2[%c0_3, %c0_4] : memref<1x1024xf32, #tpu.memory_space<vmem>>, vector<1x1024xf32>
    %4 = vector.broadcast %3 : vector<1x1024xf32> to vector<8x1024xf32>
    %5 = arith.addf %2, %4 : vector<8x1024xf32>
    %c0_5 = arith.constant 0 : index
    %c0_6 = arith.constant 0 : index
    %6 = vector.load %arg3[%c0_5, %c0_6] : memref<32x128xbf16, #tpu.memory_space<vmem>>, vector<32x128xbf16>
    %c0_7 = arith.constant 0 : index
    %c0_8 = arith.constant 0 : index
    %7 = vector.load %arg4[%c0_7, %c0_8] : memref<3x32xf32, #tpu.memory_space<vmem>>, vector<3x32xf32>
    %cst_9 = arith.constant 0.000000e+00 : f32
    %8 = vector.broadcast %cst_9 : f32 to vector<8x32xf32>
    %9 = vector.extract_strided_slice %5 {offsets = [0, 0], sizes = [8, 128], strides = [1, 1]} : vector<8x1024xf32> to vector<8x128xf32>
    %10 = arith.negf %9 : vector<8x128xf32>
    %11 = math.exp %10 : vector<8x128xf32>
    %cst_10 = arith.constant 1.000000e+00 : f32
    %12 = vector.broadcast %cst_10 : f32 to vector<8x128xf32>
    %13 = arith.addf %12, %11 : vector<8x128xf32>
    %14 = arith.divf %12, %13 : vector<8x128xf32>
    %15 = math.tanh %9 : vector<8x128xf32>
    %16 = vector.extract_strided_slice %14 {offsets = [0, 0], sizes = [8, 32], strides = [1, 1]} : vector<8x128xf32> to vector<8x32xf32>
    %17 = vector.extract_strided_slice %15 {offsets = [0, 64], sizes = [8, 32], strides = [1, 1]} : vector<8x128xf32> to vector<8x32xf32>
    %18 = vector.extract_strided_slice %14 {offsets = [0, 96], sizes = [8, 32], strides = [1, 1]} : vector<8x128xf32> to vector<8x32xf32>
    %19 = arith.mulf %16, %17 : vector<8x32xf32>
    %20 = math.tanh %19 : vector<8x32xf32>
    %21 = arith.mulf %18, %20 : vector<8x32xf32>
    %22 = vector.extract_strided_slice %5 {offsets = [0, 128], sizes = [8, 128], strides = [1, 1]} : vector<8x1024xf32> to vector<8x128xf32>
    %23 = arith.truncf %21 : vector<8x32xf32> to vector<8x32xbf16>
    %cst_11 = arith.constant dense<0.000000e+00> : vector<8x128xf32>
    %24 = tpu.matmul %23, %6, %cst_11 {dimension_numbers = #tpu.dot_dimension_numbers<[1], [0], [0], [1], [0, 0, 1, 1], [], []>} : vector<8x32xbf16>, vector<32x128xbf16>, vector<8x128xf32> -> vector<8x128xf32>
    %25 = arith.addf %22, %24 : vector<8x128xf32>
    %26 = arith.negf %25 : vector<8x128xf32>
    %27 = math.exp %26 : vector<8x128xf32>
    %cst_12 = arith.constant 1.000000e+00 : f32
    %28 = vector.broadcast %cst_12 : f32 to vector<8x128xf32>
    %29 = arith.addf %28, %27 : vector<8x128xf32>
    %30 = arith.divf %28, %29 : vector<8x128xf32>
    %31 = math.tanh %25 : vector<8x128xf32>
    %32 = vector.extract_strided_slice %30 {offsets = [0, 0], sizes = [8, 32], strides = [1, 1]} : vector<8x128xf32> to vector<8x32xf32>
    %33 = vector.extract_strided_slice %30 {offsets = [0, 32], sizes = [8, 32], strides = [1, 1]} : vector<8x128xf32> to vector<8x32xf32>
    %34 = vector.extract_strided_slice %31 {offsets = [0, 64], sizes = [8, 32], strides = [1, 1]} : vector<8x128xf32> to vector<8x32xf32>
    %35 = vector.extract_strided_slice %30 {offsets = [0, 96], sizes = [8, 32], strides = [1, 1]} : vector<8x128xf32> to vector<8x32xf32>
    %36 = arith.mulf %33, %19 : vector<8x32xf32>
    %37 = arith.mulf %32, %34 : vector<8x32xf32>
    %38 = arith.addf %36, %37 : vector<8x32xf32>
    %39 = math.tanh %38 : vector<8x32xf32>
    %40 = arith.mulf %35, %39 : vector<8x32xf32>
    %41 = vector.extract_strided_slice %5 {offsets = [0, 256], sizes = [8, 128], strides = [1, 1]} : vector<8x1024xf32> to vector<8x128xf32>
    %42 = arith.truncf %40 : vector<8x32xf32> to vector<8x32xbf16>
    %cst_13 = arith.constant dense<0.000000e+00> : vector<8x128xf32>
    %43 = tpu.matmul %42, %6, %cst_13 {dimension_numbers = #tpu.dot_dimension_numbers<[1], [0], [0], [1], [0, 0, 1, 1], [], []>} : vector<8x32xbf16>, vector<32x128xbf16>, vector<8x128xf32> -> vector<8x128xf32>
    %44 = arith.addf %41, %43 : vector<8x128xf32>
    %45 = arith.negf %44 : vector<8x128xf32>
    %46 = math.exp %45 : vector<8x128xf32>
    %cst_14 = arith.constant 1.000000e+00 : f32
    %47 = vector.broadcast %cst_14 : f32 to vector<8x128xf32>
    %48 = arith.addf %47, %46 : vector<8x128xf32>
    %49 = arith.divf %47, %48 : vector<8x128xf32>
    %50 = math.tanh %44 : vector<8x128xf32>
    %51 = vector.extract_strided_slice %49 {offsets = [0, 0], sizes = [8, 32], strides = [1, 1]} : vector<8x128xf32> to vector<8x32xf32>
    %52 = vector.extract_strided_slice %49 {offsets = [0, 32], sizes = [8, 32], strides = [1, 1]} : vector<8x128xf32> to vector<8x32xf32>
    %53 = vector.extract_strided_slice %50 {offsets = [0, 64], sizes = [8, 32], strides = [1, 1]} : vector<8x128xf32> to vector<8x32xf32>
    %54 = vector.extract_strided_slice %49 {offsets = [0, 96], sizes = [8, 32], strides = [1, 1]} : vector<8x128xf32> to vector<8x32xf32>
    %55 = arith.mulf %52, %38 : vector<8x32xf32>
    %56 = arith.mulf %51, %53 : vector<8x32xf32>
    %57 = arith.addf %55, %56 : vector<8x32xf32>
    %58 = math.tanh %57 : vector<8x32xf32>
    %59 = arith.mulf %54, %58 : vector<8x32xf32>
    %60 = vector.extract_strided_slice %5 {offsets = [0, 384], sizes = [8, 128], strides = [1, 1]} : vector<8x1024xf32> to vector<8x128xf32>
    %61 = arith.truncf %59 : vector<8x32xf32> to vector<8x32xbf16>
    %cst_15 = arith.constant dense<0.000000e+00> : vector<8x128xf32>
    %62 = tpu.matmul %61, %6, %cst_15 {dimension_numbers = #tpu.dot_dimension_numbers<[1], [0], [0], [1], [0, 0, 1, 1], [], []>} : vector<8x32xbf16>, vector<32x128xbf16>, vector<8x128xf32> -> vector<8x128xf32>
    %63 = arith.addf %60, %62 : vector<8x128xf32>
    %64 = arith.negf %63 : vector<8x128xf32>
    %65 = math.exp %64 : vector<8x128xf32>
    %cst_16 = arith.constant 1.000000e+00 : f32
    %66 = vector.broadcast %cst_16 : f32 to vector<8x128xf32>
    %67 = arith.addf %66, %65 : vector<8x128xf32>
    %68 = arith.divf %66, %67 : vector<8x128xf32>
    %69 = math.tanh %63 : vector<8x128xf32>
    %70 = vector.extract_strided_slice %68 {offsets = [0, 0], sizes = [8, 32], strides = [1, 1]} : vector<8x128xf32> to vector<8x32xf32>
    %71 = vector.extract_strided_slice %68 {offsets = [0, 32], sizes = [8, 32], strides = [1, 1]} : vector<8x128xf32> to vector<8x32xf32>
    %72 = vector.extract_strided_slice %69 {offsets = [0, 64], sizes = [8, 32], strides = [1, 1]} : vector<8x128xf32> to vector<8x32xf32>
    %73 = vector.extract_strided_slice %68 {offsets = [0, 96], sizes = [8, 32], strides = [1, 1]} : vector<8x128xf32> to vector<8x32xf32>
    %74 = arith.mulf %71, %57 : vector<8x32xf32>
    %75 = arith.mulf %70, %72 : vector<8x32xf32>
    %76 = arith.addf %74, %75 : vector<8x32xf32>
    %77 = math.tanh %76 : vector<8x32xf32>
    %78 = arith.mulf %73, %77 : vector<8x32xf32>
    %79 = vector.extract_strided_slice %5 {offsets = [0, 512], sizes = [8, 128], strides = [1, 1]} : vector<8x1024xf32> to vector<8x128xf32>
    %80 = arith.truncf %78 : vector<8x32xf32> to vector<8x32xbf16>
    %cst_17 = arith.constant dense<0.000000e+00> : vector<8x128xf32>
    %81 = tpu.matmul %80, %6, %cst_17 {dimension_numbers = #tpu.dot_dimension_numbers<[1], [0], [0], [1], [0, 0, 1, 1], [], []>} : vector<8x32xbf16>, vector<32x128xbf16>, vector<8x128xf32> -> vector<8x128xf32>
    %82 = arith.addf %79, %81 : vector<8x128xf32>
    %83 = arith.negf %82 : vector<8x128xf32>
    %84 = math.exp %83 : vector<8x128xf32>
    %cst_18 = arith.constant 1.000000e+00 : f32
    %85 = vector.broadcast %cst_18 : f32 to vector<8x128xf32>
    %86 = arith.addf %85, %84 : vector<8x128xf32>
    %87 = arith.divf %85, %86 : vector<8x128xf32>
    %88 = math.tanh %82 : vector<8x128xf32>
    %89 = vector.extract_strided_slice %87 {offsets = [0, 0], sizes = [8, 32], strides = [1, 1]} : vector<8x128xf32> to vector<8x32xf32>
    %90 = vector.extract_strided_slice %87 {offsets = [0, 32], sizes = [8, 32], strides = [1, 1]} : vector<8x128xf32> to vector<8x32xf32>
    %91 = vector.extract_strided_slice %88 {offsets = [0, 64], sizes = [8, 32], strides = [1, 1]} : vector<8x128xf32> to vector<8x32xf32>
    %92 = vector.extract_strided_slice %87 {offsets = [0, 96], sizes = [8, 32], strides = [1, 1]} : vector<8x128xf32> to vector<8x32xf32>
    %93 = arith.mulf %90, %76 : vector<8x32xf32>
    %94 = arith.mulf %89, %91 : vector<8x32xf32>
    %95 = arith.addf %93, %94 : vector<8x32xf32>
    %96 = math.tanh %95 : vector<8x32xf32>
    %97 = arith.mulf %92, %96 : vector<8x32xf32>
    %98 = vector.extract_strided_slice %5 {offsets = [0, 640], sizes = [8, 128], strides = [1, 1]} : vector<8x1024xf32> to vector<8x128xf32>
    %99 = arith.truncf %97 : vector<8x32xf32> to vector<8x32xbf16>
    %cst_19 = arith.constant dense<0.000000e+00> : vector<8x128xf32>
    %100 = tpu.matmul %99, %6, %cst_19 {dimension_numbers = #tpu.dot_dimension_numbers<[1], [0], [0], [1], [0, 0, 1, 1], [], []>} : vector<8x32xbf16>, vector<32x128xbf16>, vector<8x128xf32> -> vector<8x128xf32>
    %101 = arith.addf %98, %100 : vector<8x128xf32>
    %102 = arith.negf %101 : vector<8x128xf32>
    %103 = math.exp %102 : vector<8x128xf32>
    %cst_20 = arith.constant 1.000000e+00 : f32
    %104 = vector.broadcast %cst_20 : f32 to vector<8x128xf32>
    %105 = arith.addf %104, %103 : vector<8x128xf32>
    %106 = arith.divf %104, %105 : vector<8x128xf32>
    %107 = math.tanh %101 : vector<8x128xf32>
    %108 = vector.extract_strided_slice %106 {offsets = [0, 0], sizes = [8, 32], strides = [1, 1]} : vector<8x128xf32> to vector<8x32xf32>
    %109 = vector.extract_strided_slice %106 {offsets = [0, 32], sizes = [8, 32], strides = [1, 1]} : vector<8x128xf32> to vector<8x32xf32>
    %110 = vector.extract_strided_slice %107 {offsets = [0, 64], sizes = [8, 32], strides = [1, 1]} : vector<8x128xf32> to vector<8x32xf32>
    %111 = vector.extract_strided_slice %106 {offsets = [0, 96], sizes = [8, 32], strides = [1, 1]} : vector<8x128xf32> to vector<8x32xf32>
    %112 = arith.mulf %109, %95 : vector<8x32xf32>
    %113 = arith.mulf %108, %110 : vector<8x32xf32>
    %114 = arith.addf %112, %113 : vector<8x32xf32>
    %115 = math.tanh %114 : vector<8x32xf32>
    %116 = arith.mulf %111, %115 : vector<8x32xf32>
    %117 = vector.extract_strided_slice %7 {offsets = [0, 0], sizes = [1, 32], strides = [1, 1]} : vector<3x32xf32> to vector<1x32xf32>
    %118 = vector.broadcast %117 : vector<1x32xf32> to vector<8x32xf32>
    %119 = arith.mulf %116, %118 : vector<8x32xf32>
    %120 = arith.addf %8, %119 : vector<8x32xf32>
    %121 = vector.extract_strided_slice %5 {offsets = [0, 768], sizes = [8, 128], strides = [1, 1]} : vector<8x1024xf32> to vector<8x128xf32>
    %122 = arith.truncf %116 : vector<8x32xf32> to vector<8x32xbf16>
    %cst_21 = arith.constant dense<0.000000e+00> : vector<8x128xf32>
    %123 = tpu.matmul %122, %6, %cst_21 {dimension_numbers = #tpu.dot_dimension_numbers<[1], [0], [0], [1], [0, 0, 1, 1], [], []>} : vector<8x32xbf16>, vector<32x128xbf16>, vector<8x128xf32> -> vector<8x128xf32>
    %124 = arith.addf %121, %123 : vector<8x128xf32>
    %125 = arith.negf %124 : vector<8x128xf32>
    %126 = math.exp %125 : vector<8x128xf32>
    %cst_22 = arith.constant 1.000000e+00 : f32
    %127 = vector.broadcast %cst_22 : f32 to vector<8x128xf32>
    %128 = arith.addf %127, %126 : vector<8x128xf32>
    %129 = arith.divf %127, %128 : vector<8x128xf32>
    %130 = math.tanh %124 : vector<8x128xf32>
    %131 = vector.extract_strided_slice %129 {offsets = [0, 0], sizes = [8, 32], strides = [1, 1]} : vector<8x128xf32> to vector<8x32xf32>
    %132 = vector.extract_strided_slice %129 {offsets = [0, 32], sizes = [8, 32], strides = [1, 1]} : vector<8x128xf32> to vector<8x32xf32>
    %133 = vector.extract_strided_slice %130 {offsets = [0, 64], sizes = [8, 32], strides = [1, 1]} : vector<8x128xf32> to vector<8x32xf32>
    %134 = vector.extract_strided_slice %129 {offsets = [0, 96], sizes = [8, 32], strides = [1, 1]} : vector<8x128xf32> to vector<8x32xf32>
    %135 = arith.mulf %132, %114 : vector<8x32xf32>
    %136 = arith.mulf %131, %133 : vector<8x32xf32>
    %137 = arith.addf %135, %136 : vector<8x32xf32>
    %138 = math.tanh %137 : vector<8x32xf32>
    %139 = arith.mulf %134, %138 : vector<8x32xf32>
    %140 = vector.extract_strided_slice %7 {offsets = [1, 0], sizes = [1, 32], strides = [1, 1]} : vector<3x32xf32> to vector<1x32xf32>
    %141 = vector.broadcast %140 : vector<1x32xf32> to vector<8x32xf32>
    %142 = arith.mulf %139, %141 : vector<8x32xf32>
    %143 = arith.addf %120, %142 : vector<8x32xf32>
    %144 = vector.extract_strided_slice %5 {offsets = [0, 896], sizes = [8, 128], strides = [1, 1]} : vector<8x1024xf32> to vector<8x128xf32>
    %145 = arith.truncf %139 : vector<8x32xf32> to vector<8x32xbf16>
    %cst_23 = arith.constant dense<0.000000e+00> : vector<8x128xf32>
    %146 = tpu.matmul %145, %6, %cst_23 {dimension_numbers = #tpu.dot_dimension_numbers<[1], [0], [0], [1], [0, 0, 1, 1], [], []>} : vector<8x32xbf16>, vector<32x128xbf16>, vector<8x128xf32> -> vector<8x128xf32>
    %147 = arith.addf %144, %146 : vector<8x128xf32>
    %148 = arith.negf %147 : vector<8x128xf32>
    %149 = math.exp %148 : vector<8x128xf32>
    %cst_24 = arith.constant 1.000000e+00 : f32
    %150 = vector.broadcast %cst_24 : f32 to vector<8x128xf32>
    %151 = arith.addf %150, %149 : vector<8x128xf32>
    %152 = arith.divf %150, %151 : vector<8x128xf32>
    %153 = math.tanh %147 : vector<8x128xf32>
    %154 = vector.extract_strided_slice %152 {offsets = [0, 0], sizes = [8, 32], strides = [1, 1]} : vector<8x128xf32> to vector<8x32xf32>
    %155 = vector.extract_strided_slice %152 {offsets = [0, 32], sizes = [8, 32], strides = [1, 1]} : vector<8x128xf32> to vector<8x32xf32>
    %156 = vector.extract_strided_slice %153 {offsets = [0, 64], sizes = [8, 32], strides = [1, 1]} : vector<8x128xf32> to vector<8x32xf32>
    %157 = vector.extract_strided_slice %152 {offsets = [0, 96], sizes = [8, 32], strides = [1, 1]} : vector<8x128xf32> to vector<8x32xf32>
    %158 = arith.mulf %155, %137 : vector<8x32xf32>
    %159 = arith.mulf %154, %156 : vector<8x32xf32>
    %160 = arith.addf %158, %159 : vector<8x32xf32>
    %161 = math.tanh %160 : vector<8x32xf32>
    %162 = arith.mulf %157, %161 : vector<8x32xf32>
    %163 = vector.extract_strided_slice %7 {offsets = [2, 0], sizes = [1, 32], strides = [1, 1]} : vector<3x32xf32> to vector<1x32xf32>
    %164 = vector.broadcast %163 : vector<1x32xf32> to vector<8x32xf32>
    %165 = arith.mulf %162, %164 : vector<8x32xf32>
    %166 = arith.addf %143, %165 : vector<8x32xf32>
    %cst_25 = arith.constant dense<0.000000e+00> : vector<8xf32>
    %167 = vector.multi_reduction <add>, %166, %cst_25 [1] : vector<8x32xf32> to vector<8xf32>
    %168 = vector.shape_cast %167 : vector<8xf32> to vector<8x1xf32>
    %c0_26 = arith.constant 0 : index
    %c0_27 = arith.constant 0 : index
    %169 = vector.load %arg7[%c0_26, %c0_27] : memref<4x128xf32, #tpu.memory_space<vmem>>, vector<4x128xf32>
    %170 = tpu.concatenate %169, %169 in 0 : vector<4x128xf32>, vector<4x128xf32> -> vector<8x128xf32>
    %c0_28 = arith.constant 0 : index
    %c0_29 = arith.constant 0 : index
    %171 = vector.load %arg6[%c0_28, %c0_29] : memref<2x8xf32, #tpu.memory_space<vmem>>, vector<2x8xf32>
    %172 = vector.broadcast %168 : vector<8x1xf32> to vector<8x128xf32>
    %173 = arith.mulf %172, %170 : vector<8x128xf32>
    %cst_30 = arith.constant dense<0.000000e+00> : vector<2x128xf32>
    %174 = tpu.matmul %171, %173, %cst_30 {dimension_numbers = #tpu.dot_dimension_numbers<[1], [0], [0], [1], [0, 0, 1, 1], [], []>} : vector<2x8xf32>, vector<8x128xf32>, vector<2x128xf32> -> vector<2x128xf32>
    %c0_31 = arith.constant 0 : index
    %c0_32 = arith.constant 0 : index
    %175 = vector.load %arg5[%c0_31, %c0_32] : memref<2x4xf32, #tpu.memory_space<vmem>>, vector<2x4xf32>
    %c0_33 = arith.constant 0 : index
    %c0_34 = arith.constant 0 : index
    %176 = vector.load %arg8[%c0_33, %c0_34] : memref<4x128xf32, #tpu.memory_space<vmem>>, vector<4x128xf32>
    %cst_35 = arith.constant dense<0.000000e+00> : vector<2x128xf32>
    %177 = tpu.matmul %175, %176, %cst_35 {dimension_numbers = #tpu.dot_dimension_numbers<[1], [0], [0], [1], [0, 0, 1, 1], [], []>} : vector<2x4xf32>, vector<4x128xf32>, vector<2x128xf32> -> vector<2x128xf32>
    %178 = arith.addf %174, %177 : vector<2x128xf32>
    %c0_36 = arith.constant 0 : index
    %c0_37 = arith.constant 0 : index
    %179 = vector.load %arg9[%c0_36, %c0_37] : memref<1x128xf32, #tpu.memory_space<vmem>>, vector<1x128xf32>
    %180 = vector.broadcast %179 : vector<1x128xf32> to vector<2x128xf32>
    %181 = arith.addf %178, %180 : vector<2x128xf32>
    %cst_38 = arith.constant 0.000000e+00 : f32
    %182 = vector.broadcast %cst_38 : f32 to vector<2x128xf32>
    %183 = arith.maximumf %181, %182 : vector<2x128xf32>
    %c0_39 = arith.constant 0 : index
    %c0_40 = arith.constant 0 : index
    %184 = vector.load %arg10[%c0_39, %c0_40] : memref<128x5xf32, #tpu.memory_space<vmem>>, vector<128x5xf32>
    %cst_41 = arith.constant dense<0.000000e+00> : vector<2x5xf32>
    %185 = tpu.matmul %183, %184, %cst_41 {dimension_numbers = #tpu.dot_dimension_numbers<[1], [0], [0], [1], [0, 0, 1, 1], [], []>} : vector<2x128xf32>, vector<128x5xf32>, vector<2x5xf32> -> vector<2x5xf32>
    %c0_42 = arith.constant 0 : index
    %c0_43 = arith.constant 0 : index
    %186 = vector.load %arg11[%c0_42, %c0_43] : memref<1x5xf32, #tpu.memory_space<vmem>>, vector<1x5xf32>
    %187 = vector.broadcast %186 : vector<1x5xf32> to vector<2x5xf32>
    %188 = arith.addf %185, %187 : vector<2x5xf32>
    %189 = tpu.iota {dimensions = array<i32: 1>} : vector<2x5xi32>
    %c4_i32 = arith.constant 4 : i32
    %190 = vector.broadcast %c4_i32 : i32 to vector<2x5xi32>
    %191 = arith.cmpi slt, %189, %190 : vector<2x5xi32>
    %cst_44 = arith.constant -1.000000e+30 : f32
    %192 = vector.broadcast %cst_44 : f32 to vector<2x5xf32>
    %193 = arith.select %191, %188, %192 : vector<2x5xi1>, vector<2x5xf32>
    %cst_45 = arith.constant dense<0xFF800000> : vector<2xf32>
    %194 = vector.multi_reduction <maximumf>, %193, %cst_45 [1] : vector<2x5xf32> to vector<2xf32>
    %195 = vector.shape_cast %194 : vector<2xf32> to vector<2x1xf32>
    %196 = vector.broadcast %195 : vector<2x1xf32> to vector<2x5xf32>
    %197 = arith.subf %193, %196 : vector<2x5xf32>
    %198 = math.exp %197 : vector<2x5xf32>
    %cst_46 = arith.constant dense<0.000000e+00> : vector<2xf32>
    %199 = vector.multi_reduction <add>, %198, %cst_46 [1] : vector<2x5xf32> to vector<2xf32>
    %200 = vector.shape_cast %199 : vector<2xf32> to vector<2x1xf32>
    %201 = tpu.reciprocal %200 {approx = true} : vector<2x1xf32> -> vector<2x1xf32>
    %202 = vector.broadcast %201 : vector<2x1xf32> to vector<2x5xf32>
    %203 = arith.mulf %198, %202 : vector<2x5xf32>
    %204 = arith.select %191, %203, %188 : vector<2x5xi1>, vector<2x5xf32>
    %c0_47 = arith.constant 0 : index
    %c0_48 = arith.constant 0 : index
    %205 = vector.load %arg12[%c0_47, %c0_48] : memref<2x5xf32, #tpu.memory_space<vmem>>, vector<2x5xf32>
    tpu.vector_store %arg12[%c0_47, %c0_48], %204 {strides = array<i32>} : memref<2x5xf32, #tpu.memory_space<vmem>>, vector<2x5xf32>,
    return
  }
}

</mosaic_0001>

<llo_original>
// kernel: actor_critic_eiie_forward.1
$region0: #{actor_critic_eiie_forward.1}
  #allocation0 [shape = 'u32[]', space=smem, size = 0x4, offset = 0x4, fixed_abs, tag = 'smem constant byte address 0x4 - core index']
  #allocation1 [shape = 'u32[72,128]{1,0:T(1,128)}', space=vmem, size = 0x9000, scoped, tag = 'internal scratch']
  %s0 = inlined_call_operand.vmem [shape: f32[8,24], index: 0, kind: input, shape index: {}]
  %s1 = inlined_call_operand.vmem [shape: f32[24,1024], index: 1, kind: input, shape index: {}]
  %s2 = inlined_call_operand.vmem [shape: f32[1,1024], index: 2, kind: input, shape index: {}]
  %s3 = inlined_call_operand.vmem [shape: bf16[32,128], index: 3, kind: input, shape index: {}]
  %s4 = inlined_call_operand.vmem [shape: f32[3,32], index: 4, kind: input, shape index: {}]
  %s5 = inlined_call_operand.vmem [shape: f32[2,4], index: 5, kind: input, shape index: {}]
  %s6 = inlined_call_operand.vmem [shape: f32[2,8], index: 6, kind: input, shape index: {}]
  %s7 = inlined_call_operand.vmem [shape: f32[4,128], index: 7, kind: input, shape index: {}]
  %s8 = inlined_call_operand.vmem [shape: f32[4,128], index: 8, kind: input, shape index: {}]
  %s9 = inlined_call_operand.vmem [shape: f32[1,128], index: 9, kind: input, shape index: {}]
  %s10 = inlined_call_operand.vmem [shape: f32[128,5], index: 10, kind: input, shape index: {}]
  %s11 = inlined_call_operand.vmem [shape: f32[1,5], index: 11, kind: input, shape index: {}]
  %s12 = inlined_call_operand.vmem [shape: f32[2,5], index: 12, kind: output, shape index: {}]
  %s13 = sld [smem:[#allocation0]]
  $region58: #{actor_critic_eiie_forward.1} parent=0
    _
  %s15 = ssub.s32 1, %s13
  %s16 = scalar_select 0, %s15, %s13
  // Predicated region
  $region2: #{actor_critic_eiie_forward.1} parent=0 // pred_check
    _
  $region3: #{actor_critic_eiie_forward.1} parent=0 // pred_check_branch
    %18 = sbr.rel (0) target = $region5
  $region4: #{actor_critic_eiie_forward.1} parent=0 // pred_region
    _
  $region5: #{actor_critic_eiie_forward.1} parent=0 // pred_fallthru
    _
  // Predicated region
  $region6: #{actor_critic_eiie_forward.1} parent=0 // pred_check
    _
  $region7: #{actor_critic_eiie_forward.1} parent=0 // pred_check_branch
    %20 = sbr.rel (0) target = $region9
  $region8: #{actor_critic_eiie_forward.1} parent=0 // pred_region
    _
  $region9: #{actor_critic_eiie_forward.1} parent=0 // pred_fallthru
    _
  // Predicated region
  $region10: #{actor_critic_eiie_forward.1} parent=0 // pred_check
    _
  $region11: #{actor_critic_eiie_forward.1} parent=0 // pred_check_branch
    %22 = sbr.rel (0) target = $region13
  $region12: #{actor_critic_eiie_forward.1} parent=0 // pred_region
    _
  $region13: #{actor_critic_eiie_forward.1} parent=0 // pred_fallthru
    _
  // Predicated region
  $region14: #{actor_critic_eiie_forward.1} parent=0 // pred_check
    _
  $region15: #{actor_critic_eiie_forward.1} parent=0 // pred_check_branch
    %24 = sbr.rel (0) target = $region17
  $region16: #{actor_critic_eiie_forward.1} parent=0 // pred_region
    _
  $region17: #{actor_critic_eiie_forward.1} parent=0 // pred_fallthru
    _
  // Predicated region
  $region18: #{actor_critic_eiie_forward.1} parent=0 // pred_check
    _
  $region19: #{actor_critic_eiie_forward.1} parent=0 // pred_check_branch
    %26 = sbr.rel (0) target = $region21
  $region20: #{actor_critic_eiie_forward.1} parent=0 // pred_region
    _
  $region21: #{actor_critic_eiie_forward.1} parent=0 // pred_fallthru
    _
  // Predicated region
  $region22: #{actor_critic_eiie_forward.1} parent=0 // pred_check
    _
  $region23: #{actor_critic_eiie_forward.1} parent=0 // pred_check_branch
    %28 = sbr.rel (0) target = $region25
  $region24: #{actor_critic_eiie_forward.1} parent=0 // pred_region
    _
  $region25: #{actor_critic_eiie_forward.1} parent=0 // pred_fallthru
    _
  // Predicated region
  $region26: #{actor_critic_eiie_forward.1} parent=0 // pred_check
    _
  $region27: #{actor_critic_eiie_forward.1} parent=0 // pred_check_branch
    %30 = sbr.rel (0) target = $region29
  $region28: #{actor_critic_eiie_forward.1} parent=0 // pred_region
    _
  $region29: #{actor_critic_eiie_forward.1} parent=0 // pred_fallthru
    _
  // Predicated region
  $region30: #{actor_critic_eiie_forward.1} parent=0 // pred_check
    _
  $region31: #{actor_critic_eiie_forward.1} parent=0 // pred_check_branch
    %32 = sbr.rel (0) target = $region33
  $region32: #{actor_critic_eiie_forward.1} parent=0 // pred_region
    _
  $region33: #{actor_critic_eiie_forward.1} parent=0 // pred_fallthru
    _
  // Predicated region
  $region34: #{actor_critic_eiie_forward.1} parent=0 // pred_check
    _
  $region35: #{actor_critic_eiie_forward.1} parent=0 // pred_check_branch
    %34 = sbr.rel (0) target = $region37
  $region36: #{actor_critic_eiie_forward.1} parent=0 // pred_region
    _
  $region37: #{actor_critic_eiie_forward.1} parent=0 // pred_fallthru
    _
  // Predicated region
  $region38: #{actor_critic_eiie_forward.1} parent=0 // pred_check
    _
  $region39: #{actor_critic_eiie_forward.1} parent=0 // pred_check_branch
    %36 = sbr.rel (0) target = $region41
  $region40: #{actor_critic_eiie_forward.1} parent=0 // pred_region
    _
  $region41: #{actor_critic_eiie_forward.1} parent=0 // pred_fallthru
    _
  // Predicated region
  $region42: #{actor_critic_eiie_forward.1} parent=0 // pred_check
    _
  $region43: #{actor_critic_eiie_forward.1} parent=0 // pred_check_branch
    %38 = sbr.rel (0) target = $region45
  $region44: #{actor_critic_eiie_forward.1} parent=0 // pred_region
    _
  $region45: #{actor_critic_eiie_forward.1} parent=0 // pred_fallthru
    _
  // Predicated region
  $region46: #{actor_critic_eiie_forward.1} parent=0 // pred_check
    _
  $region47: #{actor_critic_eiie_forward.1} parent=0 // pred_check_branch
    %40 = sbr.rel (0) target = $region49
  $region48: #{actor_critic_eiie_forward.1} parent=0 // pred_region
    _
  $region49: #{actor_critic_eiie_forward.1} parent=0 // pred_fallthru
    _
  %v42 = vld [vmem:[%s0] sm:$0xff]
  %v43 = vld [vmem:[%s1] sm:$0xff]
  %v44 = vld [vmem:[%s1 + $0x8] sm:$0xff]
  %v45 = vld [vmem:[%s1 + $0x10] sm:$0xff]
  %v46 = vld [vmem:[%s1 + $0x18] sm:$0xff]
  %v47 = vld [vmem:[%s1 + $0x20] sm:$0xff]
  %v48 = vld [vmem:[%s1 + $0x28] sm:$0xff]
  %v49 = vld [vmem:[%s1 + $0x30] sm:$0xff]
  %v50 = vld [vmem:[%s1 + $0x38] sm:$0xff]
  %v51 = vld [vmem:[%s1 + $0x40] sm:$0xff]
  %v52 = vld [vmem:[%s1 + $0x48] sm:$0xff]
  %v53 = vld [vmem:[%s1 + $0x50] sm:$0xff]
  %v54 = vld [vmem:[%s1 + $0x58] sm:$0xff]
  %v55 = vld [vmem:[%s1 + $0x60] sm:$0xff]
  %v56 = vld [vmem:[%s1 + $0x68] sm:$0xff]
  %v57 = vld [vmem:[%s1 + $0x70] sm:$0xff]
  %v58 = vld [vmem:[%s1 + $0x78] sm:$0xff]
  %v59 = vld [vmem:[%s1 + $0x80] sm:$0xff]
  %v60 = vld [vmem:[%s1 + $0x88] sm:$0xff]
  %v61 = vld [vmem:[%s1 + $0x90] sm:$0xff]
  %v62 = vld [vmem:[%s1 + $0x98] sm:$0xff]
  %v63 = vld [vmem:[%s1 + $0xa0] sm:$0xff]
  %v64 = vld [vmem:[%s1 + $0xa8] sm:$0xff]
  %v65 = vld [vmem:[%s1 + $0xb0] sm:$0xff]
  %v66 = vld [vmem:[%s1 + $0xb8] sm:$0xff]
  %v67 = vld [vmem:[%s2] sm:$0xff]
  %v69 = vperm.slane %v67, 0
  %v70 = vperm.slane %v67, 1
  %v71 = vperm.slane %v67, 2
  %v72 = vperm.slane %v67, 3
  %v73 = vperm.slane %v67, 4
  %v74 = vperm.slane %v67, 5
  %v75 = vperm.slane %v67, 6
  %v76 = vperm.slane %v67, 7
  %vm85 = vcmask 195584
  %v87 = vsel %vm85, %v42, 0
  %89 = vmatpush.msra.mxu0 0.0
  %90 = vmatpush.msra.mxu0 0.0
  %91 = vmatpush.msra.mxu0 0.0
  %92 = vmatpush.msra.mxu0 0.0
  %93 = vmatpush.msra.mxu0 0.0
  %94 = vmatpush.msra.mxu0 0.0
  %95 = vmatpush.msra.mxu0 0.0
  %96 = vmatpush.msra.mxu0 0.0
  %97 = vmatpush.msra.mxu0 0.0
  %98 = vmatpush.msra.mxu0 0.0
  %99 = vmatpush.msra.mxu0 0.0
  %100 = vmatpush.msra.mxu0 0.0
  %101 = vmatpush.msra.mxu0 0.0
  %102 = vmatpush.msra.mxu0 %v59
  %103 = vmatpush.msra.mxu0 %v51
  %104 = vmatpush.msra.mxu0 %v43
  %105 = vmatmul.f32.gmra.mxu0 %v87
  %v106 = vpop.f32.mrf.mxu0
  %v107 = vadd.f32 %v69, %v106
  %108 = vdwg.mxu0
  %109 = vmatpush.msra.mxu0 0.0
  %110 = vmatpush.msra.mxu0 0.0
  %111 = vmatpush.msra.mxu0 0.0
  %112 = vmatpush.msra.mxu0 0.0
  %113 = vmatpush.msra.mxu0 0.0
  %114 = vmatpush.msra.mxu0 0.0
  %115 = vmatpush.msra.mxu0 0.0
  %116 = vmatpush.msra.mxu0 0.0
  %117 = vmatpush.msra.mxu0 0.0
  %118 = vmatpush.msra.mxu0 0.0
  %119 = vmatpush.msra.mxu0 0.0
  %120 = vmatpush.msra.mxu0 0.0
  %121 = vmatpush.msra.mxu0 0.0
  %122 = vmatpush.msra.mxu0 %v60
  %123 = vmatpush.msra.mxu0 %v52
  %124 = vmatpush.msra.mxu0 %v44
  %125 = vmatmul.f32.gmra.mxu0 %v87
  %v126 = vpop.f32.mrf.mxu0
  %v127 = vadd.f32 %v70, %v126
  %128 = vdwg.mxu0
  %129 = vmatpush.msra.mxu0 0.0
  %130 = vmatpush.msra.mxu0 0.0
  %131 = vmatpush.msra.mxu0 0.0
  %132 = vmatpush.msra.mxu0 0.0
  %133 = vmatpush.msra.mxu0 0.0
  %134 = vmatpush.msra.mxu0 0.0
  %135 = vmatpush.msra.mxu0 0.0
  %136 = vmatpush.msra.mxu0 0.0
  %137 = vmatpush.msra.mxu0 0.0
  %138 = vmatpush.msra.mxu0 0.0
  %139 = vmatpush.msra.mxu0 0.0
  %140 = vmatpush.msra.mxu0 0.0
  %141 = vmatpush.msra.mxu0 0.0
  %142 = vmatpush.msra.mxu0 %v61
  %143 = vmatpush.msra.mxu0 %v53
  %144 = vmatpush.msra.mxu0 %v45
  %145 = vmatmul.f32.gmra.mxu0 %v87
  %v146 = vpop.f32.mrf.mxu0
  %v147 = vadd.f32 %v71, %v146
  %148 = vdwg.mxu0
  %149 = vmatpush.msra.mxu0 0.0
  %150 = vmatpush.msra.mxu0 0.0
  %151 = vmatpush.msra.mxu0 0.0
  %152 = vmatpush.msra.mxu0 0.0
  %153 = vmatpush.msra.mxu0 0.0
  %154 = vmatpush.msra.mxu0 0.0
  %155 = vmatpush.msra.mxu0 0.0
  %156 = vmatpush.msra.mxu0 0.0
  %157 = vmatpush.msra.mxu0 0.0
  %158 = vmatpush.msra.mxu0 0.0
  %159 = vmatpush.msra.mxu0 0.0
  %160 = vmatpush.msra.mxu0 0.0
  %161 = vmatpush.msra.mxu0 0.0
  %162 = vmatpush.msra.mxu0 %v62
  %163 = vmatpush.msra.mxu0 %v54
  %164 = vmatpush.msra.mxu0 %v46
  %165 = vmatmul.f32.gmra.mxu0 %v87
  %v166 = vpop.f32.mrf.mxu0
  %v167 = vadd.f32 %v72, %v166
  %168 = vdwg.mxu0
  %169 = vmatpush.msra.mxu0 0.0
  %170 = vmatpush.msra.mxu0 0.0
  %171 = vmatpush.msra.mxu0 0.0
  %172 = vmatpush.msra.mxu0 0.0
  %173 = vmatpush.msra.mxu0 0.0
  %174 = vmatpush.msra.mxu0 0.0
  %175 = vmatpush.msra.mxu0 0.0
  %176 = vmatpush.msra.mxu0 0.0
  %177 = vmatpush.msra.mxu0 0.0
  %178 = vmatpush.msra.mxu0 0.0
  %179 = vmatpush.msra.mxu0 0.0
  %180 = vmatpush.msra.mxu0 0.0
  %181 = vmatpush.msra.mxu0 0.0
  %182 = vmatpush.msra.mxu0 %v63
  %183 = vmatpush.msra.mxu0 %v55
  %184 = vmatpush.msra.mxu0 %v47
  %185 = vmatmul.f32.gmra.mxu0 %v87
  %v186 = vpop.f32.mrf.mxu0
  %v187 = vadd.f32 %v73, %v186
  %188 = vdwg.mxu0
  %189 = vmatpush.msra.mxu0 0.0
  %190 = vmatpush.msra.mxu0 0.0
  %191 = vmatpush.msra.mxu0 0.0
  %192 = vmatpush.msra.mxu0 0.0
  %193 = vmatpush.msra.mxu0 0.0
  %194 = vmatpush.msra.mxu0 0.0
  %195 = vmatpush.msra.mxu0 0.0
  %196 = vmatpush.msra.mxu0 0.0
  %197 = vmatpush.msra.mxu0 0.0
  %198 = vmatpush.msra.mxu0 0.0
  %199 = vmatpush.msra.mxu0 0.0
  %200 = vmatpush.msra.mxu0 0.0
  %201 = vmatpush.msra.mxu0 0.0
  %202 = vmatpush.msra.mxu0 %v64
  %203 = vmatpush.msra.mxu0 %v56
  %204 = vmatpush.msra.mxu0 %v48
  %205 = vmatmul.f32.gmra.mxu0 %v87
  %v206 = vpop.f32.mrf.mxu0
  %v207 = vadd.f32 %v74, %v206
  %208 = vdwg.mxu0
  %209 = vmatpush.msra.mxu0 0.0
  %210 = vmatpush.msra.mxu0 0.0
  %211 = vmatpush.msra.mxu0 0.0
  %212 = vmatpush.msra.mxu0 0.0
  %213 = vmatpush.msra.mxu0 0.0
  %214 = vmatpush.msra.mxu0 0.0
  %215 = vmatpush.msra.mxu0 0.0
  %216 = vmatpush.msra.mxu0 0.0
  %217 = vmatpush.msra.mxu0 0.0
  %218 = vmatpush.msra.mxu0 0.0
  %219 = vmatpush.msra.mxu0 0.0
  %220 = vmatpush.msra.mxu0 0.0
  %221 = vmatpush.msra.mxu0 0.0
  %222 = vmatpush.msra.mxu0 %v65
  %223 = vmatpush.msra.mxu0 %v57
  %224 = vmatpush.msra.mxu0 %v49
  %225 = vmatmul.f32.gmra.mxu0 %v87
  %v226 = vpop.f32.mrf.mxu0
  %v227 = vadd.f32 %v75, %v226
  %228 = vdwg.mxu0
  %229 = vmatpush.msra.mxu0 0.0
  %230 = vmatpush.msra.mxu0 0.0
  %231 = vmatpush.msra.mxu0 0.0
  %232 = vmatpush.msra.mxu0 0.0
  %233 = vmatpush.msra.mxu0 0.0
  %234 = vmatpush.msra.mxu0 0.0
  %235 = vmatpush.msra.mxu0 0.0
  %236 = vmatpush.msra.mxu0 0.0
  %237 = vmatpush.msra.mxu0 0.0
  %238 = vmatpush.msra.mxu0 0.0
  %239 = vmatpush.msra.mxu0 0.0
  %240 = vmatpush.msra.mxu0 0.0
  %241 = vmatpush.msra.mxu0 0.0
  %242 = vmatpush.msra.mxu0 %v66
  %243 = vmatpush.msra.mxu0 %v58
  %244 = vmatpush.msra.mxu0 %v50
  %245 = vmatmul.f32.gmra.mxu0 %v87
  %v246 = vpop.f32.mrf.mxu0
  %v247 = vadd.f32 %v76, %v246
  %248 = vdwg.mxu0
  %v249 = vld [vmem:[%s3] sm:$0xf]
  %v250 = vld [vmem:[%s3 + $0x4] sm:$0xf]
  %v251 = vld [vmem:[%s3 + $0x8] sm:$0xf]
  %v252 = vld [vmem:[%s3 + $0xc] sm:$0xf]
  %v253 = vld [vmem:[%s4] sm:$0x7]
  %v254 = vxor.u32 %v107, 2147483648
  %v255 = vmul.f32 %v254, 1.442695
  %v256 = vpow.pop %v255
  %v257 = vadd.f32 %v256, 1.0
  %v258 = vrcp.pop %v257
  %v259 = vmul.f32 %v257, %v258
  %v260 = vsub.f32 1.0, %v259
  %v261 = vmul.f32 %v258, %v260
  %v262 = vadd.f32 %v258, %v261
  %vm263 = vweird.f32 %v257
  %vm264 = vweird.f32 %v258
  %vm265 = vmor %vm263, %vm264
  %v266 = vsel %vm265, %v258, %v262
  %v267 = vand.u32 2147483647, %v257
  %vm268 = vcmp.eq.f32.partialorder %v267, 8.507059e+37
  %v269 = vand.u32 %v257, 2147483648
  %v270 = vor.u32 1.1754944e-38, %v269
  %v271 = vsel %vm268, %v270, %v266
  %v272 = vmul.f32 1.0, %v271
  %v273 = vtanh.pop %v107
  %275 = vrot.lane.b32.xlu0 %v273, 64
  %v276 = vpop.permute.xlu0 %275
  %v278 = vmul.f32 %v272, %v276
  %v279 = vtanh.pop %v278
  %281 = vrot.lane.b32.xlu0 %v279, 96
  %v282 = vpop.permute.xlu0 %281
  %v284 = vmul.f32 %v272, %v282
  %v285 = vpack.c.bf16 %v284, %v284
  %287 = vrot.lane.b32.xlu0 %v285, 32
  %v288 = vpop.permute.xlu0 %287
  %v293 = vunpack.c.l.b16 %v249
  %v294 = vunpack.c.l.b16 %v250
  %v295 = vunpack.c.l.b16 %v251
  %v296 = vunpack.c.l.b16 %v252
  %v297 = vpack.c.b16 %v294, %v293
  %v298 = vpack.c.b16 %v296, %v295
  %vm301 = vcmask 261120
  %v303 = vsel %vm301, %v288, 0
  %305 = vmatpush.bf16.msra.mxu0 0
  %306 = vmatpush.bf16.msra.mxu0 0
  %307 = vmatpush.bf16.msra.mxu0 0
  %308 = vmatpush.bf16.msra.mxu0 0
  %309 = vmatpush.bf16.msra.mxu0 0
  %310 = vmatpush.bf16.msra.mxu0 0
  %311 = vmatpush.bf16.msra.mxu0 %v298
  %312 = vmatpush.bf16.msra.mxu0 %v297
  %313 = vmatmul.bf16.gmra.mxu0 %v303
  %v314 = vpop.f32.mrf.mxu0
  %v315 = vadd.f32 0.0, %v314
  %v316 = vpop.f32.mrf.mxu0
  %317 = vdwg.mxu0
  %v318 = vadd.f32 %v127, %v315
  %v319 = vxor.u32 %v318, 2147483648
  %v320 = vmul.f32 %v319, 1.442695
  %v321 = vpow.pop %v320
  %v322 = vadd.f32 %v321, 1.0
  %v323 = vrcp.pop %v322
  %v324 = vmul.f32 %v322, %v323
  %v325 = vsub.f32 1.0, %v324
  %v326 = vmul.f32 %v323, %v325
  %v327 = vadd.f32 %v323, %v326
  %vm328 = vweird.f32 %v322
  %vm329 = vweird.f32 %v323
  %vm330 = vmor %vm328, %vm329
  %v331 = vsel %vm330, %v323, %v327
  %v332 = vand.u32 2147483647, %v322
  %vm333 = vcmp.eq.f32.partialorder %v332, 8.507059e+37
  %v334 = vand.u32 %v322, 2147483648
  %v335 = vor.u32 1.1754944e-38, %v334
  %v336 = vsel %vm333, %v335, %v331
  %v337 = vmul.f32 1.0, %v336
  %v338 = vtanh.pop %v318
  %340 = vrot.lane.b32.xlu0 %v278, 32
  %v341 = vpop.permute.xlu0 %340
  %v343 = vmul.f32 %v337, %v341
  %345 = vrot.lane.b32.xlu0 %v338, 64
  %v346 = vpop.permute.xlu0 %345
  %v348 = vmul.f32 %v337, %v346
  %350 = vrot.lane.b32.xlu0 %v348, 32
  %v351 = vpop.permute.xlu0 %350
  %v353 = vadd.f32 %v343, %v351
  %v354 = vtanh.pop %v353
  %356 = vrot.lane.b32.xlu0 %v354, 64
  %v357 = vpop.permute.xlu0 %356
  %v359 = vmul.f32 %v337, %v357
  %v360 = vpack.c.bf16 %v359, %v359
  %362 = vrot.lane.b32.xlu0 %v360, 32
  %v363 = vpop.permute.xlu0 %362
  %v365 = vsel %vm301, %v363, 0
  %367 = vmatpush.bf16.msra.mxu0 0
  %368 = vmatpush.bf16.msra.mxu0 0
  %369 = vmatpush.bf16.msra.mxu0 0
  %370 = vmatpush.bf16.msra.mxu0 0
  %371 = vmatpush.bf16.msra.mxu0 0
  %372 = vmatpush.bf16.msra.mxu0 0
  %373 = vmatpush.bf16.msra.mxu0 %v298
  %374 = vmatpush.bf16.msra.mxu0 %v297
  %375 = vmatmul.bf16.gmra.mxu0 %v365
  %v376 = vpop.f32.mrf.mxu0
  %v377 = vadd.f32 0.0, %v376
  %v378 = vpop.f32.mrf.mxu0
  %379 = vdwg.mxu0
  %v380 = vadd.f32 %v147, %v377
  %v381 = vxor.u32 %v380, 2147483648
  %v382 = vmul.f32 %v381, 1.442695
  %v383 = vpow.pop %v382
  %v384 = vadd.f32 %v383, 1.0
  %v385 = vrcp.pop %v384
  %v386 = vmul.f32 %v384, %v385
  %v387 = vsub.f32 1.0, %v386
  %v388 = vmul.f32 %v385, %v387
  %v389 = vadd.f32 %v385, %v388
  %vm390 = vweird.f32 %v384
  %vm391 = vweird.f32 %v385
  %vm392 = vmor %vm390, %vm391
  %v393 = vsel %vm392, %v385, %v389
  %v394 = vand.u32 2147483647, %v384
  %vm395 = vcmp.eq.f32.partialorder %v394, 8.507059e+37
  %v396 = vand.u32 %v384, 2147483648
  %v397 = vor.u32 1.1754944e-38, %v396
  %v398 = vsel %vm395, %v397, %v393
  %v399 = vmul.f32 1.0, %v398
  %v400 = vtanh.pop %v380
  %v401 = vmul.f32 %v399, %v353
  %403 = vrot.lane.b32.xlu0 %v400, 64
  %v404 = vpop.permute.xlu0 %403
  %v406 = vmul.f32 %v399, %v404
  %408 = vrot.lane.b32.xlu0 %v406, 32
  %v409 = vpop.permute.xlu0 %408
  %v411 = vadd.f32 %v401, %v409
  %v412 = vtanh.pop %v411
  %414 = vrot.lane.b32.xlu0 %v412, 64
  %v415 = vpop.permute.xlu0 %414
  %v417 = vmul.f32 %v399, %v415
  %v418 = vpack.c.bf16 %v417, %v417
  %420 = vrot.lane.b32.xlu0 %v418, 32
  %v421 = vpop.permute.xlu0 %420
  %v423 = vsel %vm301, %v421, 0
  %425 = vmatpush.bf16.msra.mxu0 0
  %426 = vmatpush.bf16.msra.mxu0 0
  %427 = vmatpush.bf16.msra.mxu0 0
  %428 = vmatpush.bf16.msra.mxu0 0
  %429 = vmatpush.bf16.msra.mxu0 0
  %430 = vmatpush.bf16.msra.mxu0 0
  %431 = vmatpush.bf16.msra.mxu0 %v298
  %432 = vmatpush.bf16.msra.mxu0 %v297
  %433 = vmatmul.bf16.gmra.mxu0 %v423
  %v434 = vpop.f32.mrf.mxu0
  %v435 = vadd.f32 0.0, %v434
  %v436 = vpop.f32.mrf.mxu0
  %437 = vdwg.mxu0
  %v438 = vadd.f32 %v167, %v435
  %v439 = vxor.u32 %v438, 2147483648
  %v440 = vmul.f32 %v439, 1.442695
  %v441 = vpow.pop %v440
  %v442 = vadd.f32 %v441, 1.0
  %v443 = vrcp.pop %v442
  %v444 = vmul.f32 %v442, %v443
  %v445 = vsub.f32 1.0, %v444
  %v446 = vmul.f32 %v443, %v445
  %v447 = vadd.f32 %v443, %v446
  %vm448 = vweird.f32 %v442
  %vm449 = vweird.f32 %v443
  %vm450 = vmor %vm448, %vm449
  %v451 = vsel %vm450, %v443, %v447
  %v452 = vand.u32 2147483647, %v442
  %vm453 = vcmp.eq.f32.partialorder %v452, 8.507059e+37
  %v454 = vand.u32 %v442, 2147483648
  %v455 = vor.u32 1.1754944e-38, %v454
  %v456 = vsel %vm453, %v455, %v451
  %v457 = vmul.f32 1.0, %v456
  %v458 = vtanh.pop %v438
  %v459 = vmul.f32 %v457, %v411
  %461 = vrot.lane.b32.xlu0 %v458, 64
  %v462 = vpop.permute.xlu0 %461
  %v464 = vmul.f32 %v457, %v462
  %466 = vrot.lane.b32.xlu0 %v464, 32
  %v467 = vpop.permute.xlu0 %466
  %v469 = vadd.f32 %v459, %v467
  %v470 = vtanh.pop %v469
  %472 = vrot.lane.b32.xlu0 %v470, 64
  %v473 = vpop.permute.xlu0 %472
  %v475 = vmul.f32 %v457, %v473
  %v476 = vpack.c.bf16 %v475, %v475
  %478 = vrot.lane.b32.xlu0 %v476, 32
  %v479 = vpop.permute.xlu0 %478
  %v481 = vsel %vm301, %v479, 0
  %483 = vmatpush.bf16.msra.mxu0 0
  %484 = vmatpush.bf16.msra.mxu0 0
  %485 = vmatpush.bf16.msra.mxu0 0
  %486 = vmatpush.bf16.msra.mxu0 0
  %487 = vmatpush.bf16.msra.mxu0 0
  %488 = vmatpush.bf16.msra.mxu0 0
  %489 = vmatpush.bf16.msra.mxu0 %v298
  %490 = vmatpush.bf16.msra.mxu0 %v297
  %491 = vmatmul.bf16.gmra.mxu0 %v481
  %v492 = vpop.f32.mrf.mxu0
  %v493 = vadd.f32 0.0, %v492
  %v494 = vpop.f32.mrf.mxu0
  %495 = vdwg.mxu0
  %v496 = vadd.f32 %v187, %v493
  %v497 = vxor.u32 %v496, 2147483648
  %v498 = vmul.f32 %v497, 1.442695
  %v499 = vpow.pop %v498
  %v500 = vadd.f32 %v499, 1.0
  %v501 = vrcp.pop %v500
  %v502 = vmul.f32 %v500, %v501
  %v503 = vsub.f32 1.0, %v502
  %v504 = vmul.f32 %v501, %v503
  %v505 = vadd.f32 %v501, %v504
  %vm506 = vweird.f32 %v500
  %vm507 = vweird.f32 %v501
  %vm508 = vmor %vm506, %vm507
  %v509 = vsel %vm508, %v501, %v505
  %v510 = vand.u32 2147483647, %v500
  %vm511 = vcmp.eq.f32.partialorder %v510, 8.507059e+37
  %v512 = vand.u32 %v500, 2147483648
  %v513 = vor.u32 1.1754944e-38, %v512
  %v514 = vsel %vm511, %v513, %v509
  %v515 = vmul.f32 1.0, %v514
  %v516 = vtanh.pop %v496
  %v517 = vmul.f32 %v515, %v469
  %519 = vrot.lane.b32.xlu0 %v516, 64
  %v520 = vpop.permute.xlu0 %519
  %v522 = vmul.f32 %v515, %v520
  %524 = vrot.lane.b32.xlu0 %v522, 32
  %v525 = vpop.permute.xlu0 %524
  %v527 = vadd.f32 %v517, %v525
  %v528 = vtanh.pop %v527
  %530 = vrot.lane.b32.xlu0 %v528, 64
  %v531 = vpop.permute.xlu0 %530
  %v533 = vmul.f32 %v515, %v531
  %v534 = vpack.c.bf16 %v533, %v533
  %536 = vrot.lane.b32.xlu0 %v534, 32
  %v537 = vpop.permute.xlu0 %536
  %v539 = vsel %vm301, %v537, 0
  %541 = vmatpush.bf16.msra.mxu0 0
  %542 = vmatpush.bf16.msra.mxu0 0
  %543 = vmatpush.bf16.msra.mxu0 0
  %544 = vmatpush.bf16.msra.mxu0 0
  %545 = vmatpush.bf16.msra.mxu0 0
  %546 = vmatpush.bf16.msra.mxu0 0
  %547 = vmatpush.bf16.msra.mxu0 %v298
  %548 = vmatpush.bf16.msra.mxu0 %v297
  %549 = vmatmul.bf16.gmra.mxu0 %v539
  %v550 = vpop.f32.mrf.mxu0
  %v551 = vadd.f32 0.0, %v550
  %v552 = vpop.f32.mrf.mxu0
  %553 = vdwg.mxu0
  %v554 = vadd.f32 %v207, %v551
  %v555 = vxor.u32 %v554, 2147483648
  %v556 = vmul.f32 %v555, 1.442695
  %v557 = vpow.pop %v556
  %v558 = vadd.f32 %v557, 1.0
  %v559 = vrcp.pop %v558
  %v560 = vmul.f32 %v558, %v559
  %v561 = vsub.f32 1.0, %v560
  %v562 = vmul.f32 %v559, %v561
  %v563 = vadd.f32 %v559, %v562
  %vm564 = vweird.f32 %v558
  %vm565 = vweird.f32 %v559
  %vm566 = vmor %vm564, %vm565
  %v567 = vsel %vm566, %v559, %v563
  %v568 = vand.u32 2147483647, %v558
  %vm569 = vcmp.eq.f32.partialorder %v568, 8.507059e+37
  %v570 = vand.u32 %v558, 2147483648
  %v571 = vor.u32 1.1754944e-38, %v570
  %v572 = vsel %vm569, %v571, %v567
  %v573 = vmul.f32 1.0, %v572
  %v574 = vtanh.pop %v554
  %v575 = vmul.f32 %v573, %v527
  %577 = vrot.lane.b32.xlu0 %v574, 64
  %v578 = vpop.permute.xlu0 %577
  %v580 = vmul.f32 %v573, %v578
  %582 = vrot.lane.b32.xlu0 %v580, 32
  %v583 = vpop.permute.xlu0 %582
  %v585 = vadd.f32 %v575, %v583
  %v586 = vtanh.pop %v585
  %588 = vrot.lane.b32.xlu0 %v586, 64
  %v589 = vpop.permute.xlu0 %588
  %v591 = vmul.f32 %v573, %v589
  %v592 = vperm.slane %v253, 0
  %594 = vrot.lane.b32.xlu0 %v592, 96
  %v595 = vpop.permute.xlu0 %594
  %v597 = vmul.f32 %v591, %v595
  %v598 = vadd.f32 %v597, 0.0
  %v599 = vpack.c.bf16 %v591, %v591
  %601 = vrot.lane.b32.xlu0 %v599, 32
  %v602 = vpop.permute.xlu0 %601
  %v604 = vsel %vm301, %v602, 0
  %606 = vmatpush.bf16.msra.mxu0 0
  %607 = vmatpush.bf16.msra.mxu0 0
  %608 = vmatpush.bf16.msra.mxu0 0
  %609 = vmatpush.bf16.msra.mxu0 0
  %610 = vmatpush.bf16.msra.mxu0 0
  %611 = vmatpush.bf16.msra.mxu0 0
  %612 = vmatpush.bf16.msra.mxu0 %v298
  %613 = vmatpush.bf16.msra.mxu0 %v297
  %614 = vmatmul.bf16.gmra.mxu0 %v604
  %v615 = vpop.f32.mrf.mxu0
  %v616 = vadd.f32 0.0, %v615
  %v617 = vpop.f32.mrf.mxu0
  %618 = vdwg.mxu0
  %v619 = vadd.f32 %v227, %v616
  %v620 = vxor.u32 %v619, 2147483648
  %v621 = vmul.f32 %v620, 1.442695
  %v622 = vpow.pop %v621
  %v623 = vadd.f32 %v622, 1.0
  %v624 = vrcp.pop %v623
  %v625 = vmul.f32 %v623, %v624
  %v626 = vsub.f32 1.0, %v625
  %v627 = vmul.f32 %v624, %v626
  %v628 = vadd.f32 %v624, %v627
  %vm629 = vweird.f32 %v623
  %vm630 = vweird.f32 %v624
  %vm631 = vmor %vm629, %vm630
  %v632 = vsel %vm631, %v624, %v628
  %v633 = vand.u32 2147483647, %v623
  %vm634 = vcmp.eq.f32.partialorder %v633, 8.507059e+37
  %v635 = vand.u32 %v623, 2147483648
  %v636 = vor.u32 1.1754944e-38, %v635
  %v637 = vsel %vm634, %v636, %v632
  %v638 = vmul.f32 1.0, %v637
  %v639 = vtanh.pop %v619
  %v640 = vmul.f32 %v638, %v585
  %642 = vrot.lane.b32.xlu0 %v639, 64
  %v643 = vpop.permute.xlu0 %642
  %v645 = vmul.f32 %v638, %v643
  %647 = vrot.lane.b32.xlu0 %v645, 32
  %v648 = vpop.permute.xlu0 %647
  %v650 = vadd.f32 %v640, %v648
  %v651 = vtanh.pop %v650
  %653 = vrot.lane.b32.xlu0 %v651, 64
  %v654 = vpop.permute.xlu0 %653
  %v656 = vmul.f32 %v638, %v654
  %v657 = vperm.slane %v253, 1
  %659 = vrot.lane.b32.xlu0 %v657, 96
  %v660 = vpop.permute.xlu0 %659
  %v662 = vmul.f32 %v656, %v660
  %v663 = vadd.f32 %v598, %v662
  %v664 = vpack.c.bf16 %v656, %v656
  %666 = vrot.lane.b32.xlu0 %v664, 32
  %v667 = vpop.permute.xlu0 %666
  %v669 = vsel %vm301, %v667, 0
  %671 = vmatpush.bf16.msra.mxu0 0
  %672 = vmatpush.bf16.msra.mxu0 0
  %673 = vmatpush.bf16.msra.mxu0 0
  %674 = vmatpush.bf16.msra.mxu0 0
  %675 = vmatpush.bf16.msra.mxu0 0
  %676 = vmatpush.bf16.msra.mxu0 0
  %677 = vmatpush.bf16.msra.mxu0 %v298
  %678 = vmatpush.bf16.msra.mxu0 %v297
  %679 = vmatmul.bf16.gmra.mxu0 %v669
  %v680 = vpop.f32.mrf.mxu0
  %v681 = vadd.f32 0.0, %v680
  %v682 = vpop.f32.mrf.mxu0
  %683 = vdwg.mxu0
  %v684 = vadd.f32 %v247, %v681
  %v685 = vxor.u32 %v684, 2147483648
  %v686 = vmul.f32 %v685, 1.442695
  %v687 = vpow.pop %v686
  %v688 = vadd.f32 %v687, 1.0
  %v689 = vrcp.pop %v688
  %v690 = vmul.f32 %v688, %v689
  %v691 = vsub.f32 1.0, %v690
  %v692 = vmul.f32 %v689, %v691
  %v693 = vadd.f32 %v689, %v692
  %vm694 = vweird.f32 %v688
  %vm695 = vweird.f32 %v689
  %vm696 = vmor %vm694, %vm695
  %v697 = vsel %vm696, %v689, %v693
  %v698 = vand.u32 2147483647, %v688
  %vm699 = vcmp.eq.f32.partialorder %v698, 8.507059e+37
  %v700 = vand.u32 %v688, 2147483648
  %v701 = vor.u32 1.1754944e-38, %v700
  %v702 = vsel %vm699, %v701, %v697
  %v703 = vmul.f32 1.0, %v702
  %v704 = vtanh.pop %v684
  %v705 = vmul.f32 %v703, %v650
  %707 = vrot.lane.b32.xlu0 %v704, 64
  %v708 = vpop.permute.xlu0 %707
  %v710 = vmul.f32 %v703, %v708
  %712 = vrot.lane.b32.xlu0 %v710, 32
  %v713 = vpop.permute.xlu0 %712
  %v715 = vadd.f32 %v705, %v713
  %v716 = vtanh.pop %v715
  %718 = vrot.lane.b32.xlu0 %v716, 64
  %v719 = vpop.permute.xlu0 %718
  %v721 = vmul.f32 %v703, %v719
  %v722 = vperm.slane %v253, 2
  %724 = vrot.lane.b32.xlu0 %v722, 96
  %v725 = vpop.permute.xlu0 %724
  %v727 = vmul.f32 %v721, %v725
  %v728 = vadd.f32 %v663, %v727
  %730 = vrot.lane.b32.xlu0 %v728, 32
  %v731 = vpop.permute.xlu0 %730
  %v733 = vsel %vm301, %v731, 0.0
  %734 = vadd.xlane.f32.xlu0 %v733
  %v735 = vpop.xlane.xlu0 %734
  %v736 = vld [vmem:[%s7] sm:$0xf]
  %v738 = vrot.slane %v736, 4
  %vm740 = vcmask 1043456
  %v741 = vsel %vm740, %v736, %v738
  %v742 = vld [vmem:[%s6] sm:$0x3]
  %v743 = vmul.f32 %v735, %v741
  %v744 = vld [vmem:[%s5] sm:$0x3]
  %v745 = vld [vmem:[%s8] sm:$0xf]
  %vm746 = vcmask 31744
  %v748 = vsel %vm746, %v744, 0
  %v751 = vsel %vm740, %v745, 0
  %753 = vmatpush.msra.mxu0 0.0
  %754 = vmatpush.msra.mxu0 0.0
  %755 = vmatpush.msra.mxu0 0.0
  %756 = vmatpush.msra.mxu0 0.0
  %757 = vmatpush.msra.mxu0 0.0
  %758 = vmatpush.msra.mxu0 0.0
  %759 = vmatpush.msra.mxu0 0.0
  %760 = vmatpush.msra.mxu0 0.0
  %761 = vmatpush.msra.mxu0 0.0
  %762 = vmatpush.msra.mxu0 0.0
  %763 = vmatpush.msra.mxu0 0.0
  %764 = vmatpush.msra.mxu0 0.0
  %765 = vmatpush.msra.mxu0 0.0
  %766 = vmatpush.msra.mxu0 0.0
  %767 = vmatpush.msra.mxu0 0.0
  %768 = vmatpush.msra.mxu0 %v751
  %769 = vmatmul.f32.gmra.mxu0 %v748
  %v770 = vpop.f32.mrf.mxu0
  %v771 = vadd.f32 0.0, %v770
  %772 = vdwg.mxu0
  %vm773 = vcmask 64512
  %v775 = vsel %vm773, %v742, 0
  %777 = vmatpush.msra.mxu0 0.0
  %778 = vmatpush.msra.mxu0 0.0
  %779 = vmatpush.msra.mxu0 0.0
  %780 = vmatpush.msra.mxu0 0.0
  %781 = vmatpush.msra.mxu0 0.0
  %782 = vmatpush.msra.mxu0 0.0
  %783 = vmatpush.msra.mxu0 0.0
  %784 = vmatpush.msra.mxu0 0.0
  %785 = vmatpush.msra.mxu0 0.0
  %786 = vmatpush.msra.mxu0 0.0
  %787 = vmatpush.msra.mxu0 0.0
  %788 = vmatpush.msra.mxu0 0.0
  %789 = vmatpush.msra.mxu0 0.0
  %790 = vmatpush.msra.mxu0 0.0
  %791 = vmatpush.msra.mxu0 0.0
  %792 = vmatpush.msra.mxu0 %v743
  %793 = vmatmul.f32.gmra.mxu0 %v775
  %v794 = vpop.f32.mrf.mxu0
  %v795 = vadd.f32 %v771, %v794
  %796 = vdwg.mxu0
  %v797 = vld [vmem:[%s9] sm:$0x1]
  %v799 = vperm.slane %v797, 0
  %v801 = vadd.f32 %v795, %v799
  %v802 = vmax.f32 %v801, 0.0
  %v803 = vld [vmem:[%s10] sm:$0xff]
  %v804 = vld [vmem:[%s10 + $0x8] sm:$0xff]
  %v805 = vld [vmem:[%s10 + $0x10] sm:$0xff]
  %v806 = vld [vmem:[%s10 + $0x18] sm:$0xff]
  %v807 = vld [vmem:[%s10 + $0x20] sm:$0xff]
  %v808 = vld [vmem:[%s10 + $0x28] sm:$0xff]
  %v809 = vld [vmem:[%s10 + $0x30] sm:$0xff]
  %v810 = vld [vmem:[%s10 + $0x38] sm:$0xff]
  %v811 = vld [vmem:[%s10 + $0x40] sm:$0xff]
  %v812 = vld [vmem:[%s10 + $0x48] sm:$0xff]
  %v813 = vld [vmem:[%s10 + $0x50] sm:$0xff]
  %v814 = vld [vmem:[%s10 + $0x58] sm:$0xff]
  %v815 = vld [vmem:[%s10 + $0x60] sm:$0xff]
  %v816 = vld [vmem:[%s10 + $0x68] sm:$0xff]
  %v817 = vld [vmem:[%s10 + $0x70] sm:$0xff]
  %v818 = vld [vmem:[%s10 + $0x78] sm:$0xff]
  %v819 = vld [vmem:[%s11] sm:$0x1]
  %v821 = vperm.slane %v819, 0
  %823 = vmatpush.msra.mxu0 %v818
  %824 = vmatpush.msra.mxu0 %v817
  %825 = vmatpush.msra.mxu0 %v816
  %826 = vmatpush.msra.mxu0 %v815
  %827 = vmatpush.msra.mxu0 %v814
  %828 = vmatpush.msra.mxu0 %v813
  %829 = vmatpush.msra.mxu0 %v812
  %830 = vmatpush.msra.mxu0 %v811
  %831 = vmatpush.msra.mxu0 %v810
  %832 = vmatpush.msra.mxu0 %v809
  %833 = vmatpush.msra.mxu0 %v808
  %834 = vmatpush.msra.mxu0 %v807
  %835 = vmatpush.msra.mxu0 %v806
  %836 = vmatpush.msra.mxu0 %v805
  %837 = vmatpush.msra.mxu0 %v804
  %838 = vmatpush.msra.mxu0 %v803
  %839 = vmatmul.f32.gmra.mxu0 %v802
  %v840 = vpop.f32.mrf.mxu0
  %v841 = vadd.f32 %v821, %v840
  %842 = vdwg.mxu0
  %v843 = vlaneseq
  %v844 = vand.u32 %v843, 127
  %vm845 = vcmp.lt.s32.totalorder %v844, 4
  %v846 = vsel %vm845, %v841, -1e+30
  %vm847 = vcmask 33792
  %v848 = vsel %vm847, %v846, -inf
  %849 = vmax.xlane.f32.xlu0 %v848
  %v850 = vpop.xlane.xlu0 %849
  %v851 = vsub.f32 %v846, %v850
  %v852 = vmul.f32 %v851, 1.442695
  %v853 = vpow.pop %v852
  %v854 = vsel %vm847, %v853, 0.0
  %855 = vadd.xlane.f32.xlu0 %v854
  %v856 = vpop.xlane.xlu0 %855
  %v857 = vrcp.pop %v856
  %v858 = vmul.f32 %v853, %v857
  %v859 = vsel %vm845, %v858, %v841
  %860 = vst.msk [vmem:[%s12] sm:$0x3] %vm847, %v859
  // Predicated region
  $region50: #{actor_critic_eiie_forward.1} parent=0 // pred_check
    _
  $region51: #{actor_critic_eiie_forward.1} parent=0 // pred_check_branch
    %862 = sbr.rel (0) target = $region53
  $region52: #{actor_critic_eiie_forward.1} parent=0 // pred_region
    _
  $region53: #{actor_critic_eiie_forward.1} parent=0 // pred_fallthru
    _
  // Predicated region
  $region54: #{actor_critic_eiie_forward.1} parent=0 // pred_check
    _
  $region55: #{actor_critic_eiie_forward.1} parent=0 // pred_check_branch
    %864 = sbr.rel (0) target = $region57
  $region56: #{actor_critic_eiie_forward.1} parent=0 // pred_region
    _
  $region57: #{actor_critic_eiie_forward.1} parent=0 // pred_fallthru
    _

</llo_original>
